<compile_context>
chip_gen: v7x
topology: tpu7x:2x2x1
jax: 0.10.0
libtpu: 0.0.40
codegen_flags: <defaults>
</compile_context>

<pallas_src>
import math
import functools

import numpy as np
import jax
import jax.numpy as jnp
from jax import lax
from jax.experimental import pallas as pl
from jax.experimental.pallas import tpu as pltpu


def _round_up(x, m):
    return ((x + m - 1) // m) * m


# --------------------------------------------------------------------------
# Tiled linear:  y = x @ w + b
# --------------------------------------------------------------------------

def _linear_kernel(x_ref, w_ref, b_ref, o_ref):
    acc = jnp.dot(x_ref[...].astype(jnp.bfloat16),
                  w_ref[...].astype(jnp.bfloat16),
                  preferred_element_type=jnp.float32)
    o_ref[...] = (acc + b_ref[...]).astype(o_ref.dtype)


def pallas_linear(x, w, b, *, tm_cap=512):
    """x: (M, K), w: (K, N), b: (N,).  Tiled over M; weight/bias stay resident."""
    M, K = x.shape
    N = w.shape[1]
    tm = min(tm_cap, _round_up(M, 8))
    return pl.pallas_call(
        _linear_kernel,
        out_shape=jax.ShapeDtypeStruct((M, N), x.dtype),
        grid=(pl.cdiv(M, tm),),
        in_specs=[pl.BlockSpec((tm, K), lambda i: (i, 0)),
                  pl.BlockSpec((K, N), lambda i: (0, 0)),    # resident weight
                  pl.BlockSpec((1, N), lambda i: (0, 0))],   # resident bias
        out_specs=pl.BlockSpec((tm, N), lambda i: (i, 0)),
        compiler_params=pltpu.CompilerParams(
            dimension_semantics=("parallel",)),
    )(x, w, b.reshape(1, N))


# --------------------------------------------------------------------------
# Fused sampling_offsets + attention_weights projection (+ in-kernel softmax)
# --------------------------------------------------------------------------

def _qproj_kernel(x_ref, w_ref, b_ref, so_ref, aw_ref, *, num_heads, n_so, lp):
    y = jnp.dot(x_ref[...].astype(jnp.bfloat16),
                w_ref[...].astype(jnp.bfloat16),
                preferred_element_type=jnp.float32) + b_ref[...]
    so_ref[...] = y[:, :n_so].astype(so_ref.dtype)
    # softmax over the L*P entries of each head (matches torch .softmax(-1))
    parts = []
    for h in range(num_heads):
        g = y[:, n_so + h * lp:n_so + (h + 1) * lp]
        g = g - jnp.max(g, axis=-1, keepdims=True)
        e = jnp.exp(g)
        parts.append(e / jnp.sum(e, axis=-1, keepdims=True))
    aw_ref[...] = jnp.concatenate(parts, axis=-1).astype(aw_ref.dtype)


def pallas_query_proj(q_flat, w_cat, b_cat, num_heads, n_so, n_aw, lp,
                      *, tm_cap=512):
    M, K = q_flat.shape
    tm = min(tm_cap, _round_up(M, 8))
    n_tot = n_so + n_aw
    kernel = functools.partial(_qproj_kernel, num_heads=num_heads,
                               n_so=n_so, lp=lp)
    return pl.pallas_call(
        kernel,
        out_shape=(jax.ShapeDtypeStruct((M, n_so), q_flat.dtype),
                   jax.ShapeDtypeStruct((M, n_aw), q_flat.dtype)),
        grid=(pl.cdiv(M, tm),),
        in_specs=[pl.BlockSpec((tm, K), lambda i: (i, 0)),
                  pl.BlockSpec((K, n_tot), lambda i: (0, 0)),
                  pl.BlockSpec((1, n_tot), lambda i: (0, 0))],
        out_specs=(pl.BlockSpec((tm, n_so), lambda i: (i, 0)),
                   pl.BlockSpec((tm, n_aw), lambda i: (i, 0))),
        compiler_params=pltpu.CompilerParams(
            dimension_semantics=("parallel",)),
    )(q_flat, w_cat, b_cat.reshape(1, n_tot))


# --------------------------------------------------------------------------
# Multi-scale deformable sampling + weighted reduction
# --------------------------------------------------------------------------

_ROLL_FWD = None


def _roll_moves_forward():
    """Probe pltpu.roll direction once (defensive: expected to match jnp.roll,
    i.e. element at lane i moves to lane i+shift)."""
    global _ROLL_FWD
    if _ROLL_FWD is None:
        def probe(x_ref, o_ref):
            o_ref[...] = pltpu.roll(x_ref[...], 1, 1)
        x = jnp.tile(jnp.arange(128, dtype=jnp.float32)[None, :], (8, 1))
        y = pl.pallas_call(
            probe, out_shape=jax.ShapeDtypeStruct((8, 128), jnp.float32))(x)
        _ROLL_FWD = bool(y[0, 1] == 0.0)
    return _ROLL_FWD


def _msda_kernel(v_ref, loc_ref, aw_ref, o_ref, *, num_heads, head_dim,
                 num_points, spatial_shapes, level_starts, roll_fwd):
    """One batch element.

    v_ref:   (1, nv_pad, D)        projected value (zero-padded rows past nv)
    loc_ref: (1, nq, H*L*P*2)      normalized sampling locations (x, y)
    aw_ref:  (1, nq, H*L*P)        softmaxed attention weights
    o_ref:   (1, nq, D)            lane-dense output
    spatial_shapes/level_starts:   static Python tuples.
    """
    v = v_ref[0]
    loc = loc_ref[0]
    aw = aw_ref[0]
    nq = loc.shape[0]
    nv_pad = v.shape[0]
    num_levels = len(spatial_shapes)
    lp = num_levels * num_points

    iota_v = lax.broadcasted_iota(jnp.int32, (nq, nv_pad), 1)

    def shifted(onehot, s):
        # move the one-hot from column c to column (c + s) mod nv_pad (XLU).
        s = s % nv_pad
        if s == 0:
            return onehot
        return pltpu.roll(onehot, s if roll_fwd else (nv_pad - s), 1)

    outs = []
    for h in range(num_heads):
        m = jnp.zeros((nq, nv_pad), jnp.float32)
        for l in range(num_levels):
            h_l, w_l = spatial_shapes[l]
            start = level_starts[l]
            h_f, w_f = float(h_l), float(w_l)
            for p in range(num_points):
                col = h * lp + l * num_points + p
                x = loc[:, 2 * col:2 * col + 1]          # (nq, 1)
                y = loc[:, 2 * col + 1:2 * col + 2]
                a = aw[:, col:col + 1]
                # grid_sample(align_corners=False): pixel = loc * size - 0.5
                ix = x * w_f - 0.5
                iy = y * h_f - 0.5
                x0f = jnp.floor(ix)
                y0f = jnp.floor(iy)
                lx = ix - x0f
                ly = iy - y0f
                x0 = x0f.astype(jnp.int32)
                y0 = y0f.astype(jnp.int32)
                # per-corner in-bounds masks (padding_mode='zeros')
                vx0 = (x0 >= 0) & (x0 < w_l)
                vx1 = (x0 >= -1) & (x0 < w_l - 1)
                vy0 = (y0 >= 0) & (y0 < h_l)
                vy1 = (y0 >= -1) & (y0 < h_l - 1)
                w00 = jnp.where(vx0 & vy0, (1.0 - lx) * (1.0 - ly) * a, 0.0)
                w01 = jnp.where(vx1 & vy0, lx * (1.0 - ly) * a, 0.0)
                w10 = jnp.where(vx0 & vy1, (1.0 - lx) * ly * a, 0.0)
                w11 = jnp.where(vx1 & vy1, lx * ly * a, 0.0)
                # one compare -> base one-hot; other 3 corners via XLU rolls.
                idx = start + y0 * w_l + x0              # (nq, 1)
                anchor = jnp.mod(idx, nv_pad)            # representable anchor
                onehot = (anchor == iota_v).astype(jnp.float32)
                m = (m
                     + w00 * onehot
                     + w01 * shifted(onehot, 1)
                     + w10 * shifted(onehot, w_l)
                     + w11 * shifted(onehot, w_l + 1))
        v_h = v[:, h * head_dim:(h + 1) * head_dim]
        outs.append(jnp.dot(m.astype(jnp.bfloat16),
                            v_h.astype(jnp.bfloat16),
                            preferred_element_type=jnp.float32))
    o_ref[0] = jnp.concatenate(outs, axis=-1).astype(o_ref.dtype)


def pallas_ms_deform_attn(value_pad, loc_r, aw_r, spatial_shapes_static,
                          level_starts_static, num_heads, num_points):
    bs, nv_pad, D = value_pad.shape
    nq = loc_r.shape[1]
    hd = D // num_heads
    kernel = functools.partial(
        _msda_kernel, num_heads=num_heads, head_dim=hd, num_points=num_points,
        spatial_shapes=spatial_shapes_static, level_starts=level_starts_static,
        roll_fwd=_roll_moves_forward())
    return pl.pallas_call(
        kernel,
        out_shape=jax.ShapeDtypeStruct((bs, nq, D), value_pad.dtype),
        grid=(bs,),
        in_specs=[pl.BlockSpec((1, nv_pad, D), lambda b: (b, 0, 0)),
                  pl.BlockSpec((1, nq, loc_r.shape[2]), lambda b: (b, 0, 0)),
                  pl.BlockSpec((1, nq, aw_r.shape[2]), lambda b: (b, 0, 0))],
        out_specs=pl.BlockSpec((1, nq, D), lambda b: (b, 0, 0)),
        compiler_params=pltpu.CompilerParams(
            dimension_semantics=("parallel",)),
    )(value_pad, loc_r, aw_r)


# --------------------------------------------------------------------------
# Parameters (deterministic, synthetic; matches the module's init scheme)
# --------------------------------------------------------------------------

def init_params(key, embed_dims, num_heads, num_levels, num_points):
    ks = jax.random.split(key, 4)

    def xavier(k, fan_in, fan_out):
        limit = math.sqrt(6.0 / (fan_in + fan_out))
        return jax.random.uniform(k, (fan_in, fan_out), jnp.float32,
                                  -limit, limit)

    w_so = 0.01 * jax.random.normal(
        ks[0], (embed_dims, num_heads * num_levels * num_points * 2),
        jnp.float32)
    thetas = jnp.arange(num_heads, dtype=jnp.float32) * (2.0 * math.pi / num_heads)
    grid_init = jnp.stack([jnp.cos(thetas), jnp.sin(thetas)], -1)
    grid_init = grid_init / jnp.max(jnp.abs(grid_init), axis=-1, keepdims=True)
    grid_init = jnp.tile(grid_init.reshape(num_heads, 1, 1, 2),
                         (1, num_levels, num_points, 1))
    grid_init = grid_init * (jnp.arange(num_points, dtype=jnp.float32)
                             + 1.0).reshape(1, 1, num_points, 1)
    b_so = grid_init.reshape(-1)

    w_aw = 0.01 * jax.random.normal(
        ks[1], (embed_dims, num_heads * num_levels * num_points), jnp.float32)
    b_aw = jnp.zeros((num_heads * num_levels * num_points,), jnp.float32)

    w_v = xavier(ks[2], embed_dims, embed_dims)
    b_v = jnp.zeros((embed_dims,), jnp.float32)
    w_o = xavier(ks[3], embed_dims, embed_dims)
    b_o = jnp.zeros((embed_dims,), jnp.float32)
    return dict(w_so=w_so, b_so=b_so, w_aw=w_aw, b_aw=b_aw,
                w_v=w_v, b_v=b_v, w_o=w_o, b_o=b_o)


# --------------------------------------------------------------------------
# Forward (thin JAX glue; hot paths in Pallas)
# --------------------------------------------------------------------------

def decoder_cross_attention(params, query, reference_points, value,
                            spatial_shapes, level_start_index,
                            num_heads, num_levels, num_points,
                            key_padding_mask=None, query_pos=None,
                            identity=None):
    embed_dims = query.shape[-1]
    if identity is None:
        identity = query
    if query_pos is not None:
        query = query + query_pos

    # batch_first=False -> permute to (bs, seq, D)
    q = jnp.transpose(query, (1, 0, 2))
    v = jnp.transpose(value, (1, 0, 2))
    bs, nq, D = q.shape
    nv = v.shape[1]

    # spatial shapes are static (they define num_value, hence array shapes).
    ss_static = tuple((int(h), int(w)) for h, w in np.asarray(spatial_shapes))
    ls_static = tuple(int(s) for s in np.asarray(level_start_index))

    # ---- value projection (tiled Pallas matmul) + pad nv to lane multiple ----
    v_proj = pallas_linear(v.reshape(bs * nv, D),
                           params["w_v"], params["b_v"]).reshape(bs, nv, D)
    if key_padding_mask is not None:
        v_proj = jnp.where(key_padding_mask[..., None], 0.0, v_proj)
    nv_pad = _round_up(nv, 128)
    if nv_pad != nv:
        v_proj = jnp.pad(v_proj, ((0, 0), (0, nv_pad - nv), (0, 0)))

    # ---- fused sampling_offsets + attention_weights projection (+softmax) ----
    lp = num_levels * num_points
    n_so = num_heads * lp * 2
    n_aw = num_heads * lp
    w_cat = jnp.concatenate([params["w_so"], params["w_aw"]], axis=1)
    b_cat = jnp.concatenate([params["b_so"], params["b_aw"]], axis=0)
    so, aw = pallas_query_proj(q.reshape(bs * nq, D), w_cat, b_cat,
                               num_heads, n_so, n_aw, lp)
    so = so.reshape(bs, nq, num_heads, num_levels, num_points, 2)
    aw = aw.reshape(bs, nq, n_aw)            # already softmaxed per head

    # sampling locations (reference_points last dim == 2 case)
    offset_normalizer = jnp.stack(
        [spatial_shapes[:, 1], spatial_shapes[:, 0]], axis=-1).astype(jnp.float32)
    sampling_locations = (
        reference_points[:, :, None, :, None, :]
        + so / offset_normalizer[None, None, None, :, None, :])
    loc_r = sampling_locations.reshape(bs, nq, n_so)

    # ---- deformable sampling + weighted reduction (Pallas) ----
    out = pallas_ms_deform_attn(v_proj, loc_r, aw, ss_static, ls_static,
                                num_heads, num_points)      # (bs, nq, D)

    # ---- output projection (tiled Pallas matmul) ----
    out = pallas_linear(out.reshape(bs * nq, D),
                        params["w_o"], params["b_o"]).reshape(bs, nq, D)
    out = jnp.transpose(out, (1, 0, 2))                      # (nq, bs, D)

    # nn.Dropout(p=0.1) is the identity at inference time
    return out + identity


# --------------------------------------------------------------------------
# Main
# --------------------------------------------------------------------------

if __name__ == "__main__":
    embed_dims, num_heads, num_levels, num_points = 32, 4, 2, 2
    bs, num_query = 2, 8
    spatial_shapes = jnp.array([[8, 8], [4, 4]], dtype=jnp.int32)      # (h, w)
    level_start_index = jnp.array([0, 64], dtype=jnp.int32)
    num_value = int((spatial_shapes[:, 0] * spatial_shapes[:, 1]).sum())

    key = jax.random.PRNGKey(0)
    k1, k2, k3, k4, kp = jax.random.split(key, 5)
    query = jax.random.normal(k1, (num_query, bs, embed_dims), jnp.float32)
    value = jax.random.normal(k2, (num_value, bs, embed_dims), jnp.float32)
    reference_points = jax.random.uniform(
        k3, (bs, num_query, num_levels, 2), jnp.float32)
    query_pos = jax.random.normal(k4, (num_query, bs, embed_dims), jnp.float32)

    params = init_params(kp, embed_dims, num_heads, num_levels, num_points)

    out = decoder_cross_attention(params, query, reference_points, value,
                                  spatial_shapes, level_start_index,
                                  num_heads, num_levels, num_points,
                                  query_pos=query_pos)
    jax.block_until_ready(out)
    assert out.shape == (num_query, bs, embed_dims)
    assert bool(jnp.all(jnp.isfinite(out)))
    print("KERNEL_OK")
</pallas_src>

<mosaic_0001>
module attributes {stable_mosaic.version = 11 : i64} {
  func.func @_linear_kernel(%arg0: i32, %arg1: memref<160x32xf32, #tpu.memory_space<vmem>>, %arg2: memref<32x32xf32, #tpu.memory_space<vmem>>, %arg3: memref<1x32xf32, #tpu.memory_space<vmem>>, %arg4: memref<160x32xf32, #tpu.memory_space<vmem>>) attributes {dimension_semantics = [#tpu.dimension_semantics<parallel>], iteration_bounds = array<i64: 1>, scalar_prefetch = 0 : i64, scratch_operands = 0 : i64, tpu.core_type = #tpu.core_type<tc>, window_params = [{transform_indices = @transform_0, window_bounds = array<i64: 160, 32>}, {pipeline_mode = #tpu.pipeline_mode<synchronous>, transform_indices = @transform_1, window_bounds = array<i64: 32, 32>}, {pipeline_mode = #tpu.pipeline_mode<synchronous>, transform_indices = @transform_2, window_bounds = array<i64: 1, 32>}, {transform_indices = @transform_3, window_bounds = array<i64: 160, 32>}]} {
    %c0 = arith.constant 0 : index
    %c0_0 = arith.constant 0 : index
    %0 = vector.load %arg1[%c0, %c0_0] : memref<160x32xf32, #tpu.memory_space<vmem>>, vector<160x32xf32>
    %1 = arith.truncf %0 : vector<160x32xf32> to vector<160x32xbf16>
    %c0_1 = arith.constant 0 : index
    %c0_2 = arith.constant 0 : index
    %2 = vector.load %arg2[%c0_1, %c0_2] : memref<32x32xf32, #tpu.memory_space<vmem>>, vector<32x32xf32>
    %3 = arith.truncf %2 : vector<32x32xf32> to vector<32x32xbf16>
    %cst = arith.constant dense<0.000000e+00> : vector<160x32xf32>
    %4 = tpu.matmul %1, %3, %cst {dimension_numbers = #tpu.dot_dimension_numbers<[1], [0], [0], [1], [0, 0, 1, 1], [], []>} : vector<160x32xbf16>, vector<32x32xbf16>, vector<160x32xf32> -> vector<160x32xf32>
    %c0_3 = arith.constant 0 : index
    %c0_4 = arith.constant 0 : index
    %5 = vector.load %arg3[%c0_3, %c0_4] : memref<1x32xf32, #tpu.memory_space<vmem>>, vector<1x32xf32>
    %6 = vector.broadcast %5 : vector<1x32xf32> to vector<160x32xf32>
    %7 = arith.addf %4, %6 : vector<160x32xf32>
    %c0_5 = arith.constant 0 : index
    %c0_6 = arith.constant 0 : index
    %8 = vector.load %arg4[%c0_5, %c0_6] : memref<160x32xf32, #tpu.memory_space<vmem>>, vector<160x32xf32>
    tpu.vector_store %arg4[%c0_5, %c0_6], %7 {strides = array<i32>} : memref<160x32xf32, #tpu.memory_space<vmem>>, vector<160x32xf32>,
    return
  }
  func.func @transform_0(%arg0: i32) -> (i32, i32) {
    %c0_i32 = arith.constant 0 : i32
    %c0_i32_0 = arith.constant 0 : i32
    return %arg0, %c0_i32 : i32, i32
  }
  func.func @transform_1(%arg0: i32) -> (i32, i32) {
    %c0_i32 = arith.constant 0 : i32
    %c0_i32_0 = arith.constant 0 : i32
    %c0_i32_1 = arith.constant 0 : i32
    return %c0_i32, %c0_i32_0 : i32, i32
  }
  func.func @transform_2(%arg0: i32) -> (i32, i32) {
    %c0_i32 = arith.constant 0 : i32
    %c0_i32_0 = arith.constant 0 : i32
    %c0_i32_1 = arith.constant 0 : i32
    return %c0_i32, %c0_i32_0 : i32, i32
  }
  func.func @transform_3(%arg0: i32) -> (i32, i32) {
    %c0_i32 = arith.constant 0 : i32
    %c0_i32_0 = arith.constant 0 : i32
    return %arg0, %c0_i32 : i32, i32
  }
}

</mosaic_0001>

<llo_original>
// kernel: tpu_custom_call.1
$region0: #{tpu_custom_call.1}
  #allocation0 [shape = 'u32[]', space=smem, size = 0x4, offset = 0x4, fixed_abs, tag = 'smem constant byte address 0x4 - core index']
  #allocation1 [shape = 'u32[144,128]{1,0:T(1,128)}', space=vmem, size = 0x12000, scoped, tag = 'internal scratch']
  %s0 = inlined_call_operand.vmem [shape: f32[160,32], index: 0, kind: input, shape index: {}]
  %s1 = inlined_call_operand.vmem [shape: f32[32,32], index: 1, kind: input, shape index: {}]
  %s2 = inlined_call_operand.vmem [shape: f32[1,32], index: 2, kind: input, shape index: {}]
  %s3 = inlined_call_operand.vmem [shape: f32[160,32], index: 3, kind: output, shape index: {}]
  %s4 = sld [smem:[#allocation0]]
  $region22: #{tpu_custom_call.1} parent=0
    _
  %s6 = ssub.s32 1, %s4
  %s7 = scalar_select 0, %s6, %s4
  // Predicated region
  $region2: #{tpu_custom_call.1} parent=0 // pred_check
    _
  $region3: #{tpu_custom_call.1} parent=0 // pred_check_branch
    %9 = sbr.rel (0) target = $region5
  $region4: #{tpu_custom_call.1} parent=0 // pred_region
    _
  $region5: #{tpu_custom_call.1} parent=0 // pred_fallthru
    _
  // Predicated region
  $region6: #{tpu_custom_call.1} parent=0 // pred_check
    _
  $region7: #{tpu_custom_call.1} parent=0 // pred_check_branch
    %11 = sbr.rel (0) target = $region9
  $region8: #{tpu_custom_call.1} parent=0 // pred_region
    _
  $region9: #{tpu_custom_call.1} parent=0 // pred_fallthru
    _
  // Predicated region
  $region10: #{tpu_custom_call.1} parent=0 // pred_check
    _
  $region11: #{tpu_custom_call.1} parent=0 // pred_check_branch
    %13 = sbr.rel (0) target = $region13
  $region12: #{tpu_custom_call.1} parent=0 // pred_region
    _
  $region13: #{tpu_custom_call.1} parent=0 // pred_fallthru
    _
  %v15 = vld [vmem:[%s0] sm:$0xff]
  %v16 = vld [vmem:[%s0 + $0x8] sm:$0xff]
  %v17 = vld [vmem:[%s0 + $0x10] sm:$0xff]
  %v18 = vld [vmem:[%s0 + $0x18] sm:$0xff]
  %v19 = vld [vmem:[%s0 + $0x20] sm:$0xff]
  %v20 = vld [vmem:[%s0 + $0x28] sm:$0xff]
  %v21 = vld [vmem:[%s0 + $0x30] sm:$0xff]
  %v22 = vld [vmem:[%s0 + $0x38] sm:$0xff]
  %v23 = vld [vmem:[%s0 + $0x40] sm:$0xff]
  %v24 = vld [vmem:[%s0 + $0x48] sm:$0xff]
  %v25 = vld [vmem:[%s0 + $0x50] sm:$0xff]
  %v26 = vld [vmem:[%s0 + $0x58] sm:$0xff]
  %v27 = vld [vmem:[%s0 + $0x60] sm:$0xff]
  %v28 = vld [vmem:[%s0 + $0x68] sm:$0xff]
  %v29 = vld [vmem:[%s0 + $0x70] sm:$0xff]
  %v30 = vld [vmem:[%s0 + $0x78] sm:$0xff]
  %v31 = vld [vmem:[%s0 + $0x80] sm:$0xff]
  %v32 = vld [vmem:[%s0 + $0x88] sm:$0xff]
  %v33 = vld [vmem:[%s0 + $0x90] sm:$0xff]
  %v34 = vld [vmem:[%s0 + $0x98] sm:$0xff]
  %v35 = vpack.c.bf16 %v16, %v15
  %v36 = vpack.c.bf16 %v18, %v17
  %v37 = vpack.c.bf16 %v20, %v19
  %v38 = vpack.c.bf16 %v22, %v21
  %v39 = vpack.c.bf16 %v24, %v23
  %v40 = vpack.c.bf16 %v26, %v25
  %v41 = vpack.c.bf16 %v28, %v27
  %v42 = vpack.c.bf16 %v30, %v29
  %v43 = vpack.c.bf16 %v32, %v31
  %v44 = vpack.c.bf16 %v34, %v33
  %v45 = vld [vmem:[%s1] sm:$0xff]
  %v46 = vld [vmem:[%s1 + $0x8] sm:$0xff]
  %v47 = vld [vmem:[%s1 + $0x10] sm:$0xff]
  %v48 = vld [vmem:[%s1 + $0x18] sm:$0xff]
  %v49 = vpack.c.bf16 %v46, %v45
  %v50 = vpack.c.bf16 %v48, %v47
  %v51 = vld [vmem:[%s2] sm:$0x1]
  %v53 = vlaneseq
  %v54 = vshrl.u32 %v53, 7
  %v55 = vsub.s32 0, %v54
  %v56 = vrot.slane %v51, %v55
  %vm58 = vcmask 261120
  %v60 = vsel %vm58, %v35, 0
  %v63 = vsel %vm58, %v36, 0
  %v66 = vsel %vm58, %v37, 0
  %v69 = vsel %vm58, %v38, 0
  %v72 = vsel %vm58, %v39, 0
  %v75 = vsel %vm58, %v40, 0
  %v78 = vsel %vm58, %v41, 0
  %v81 = vsel %vm58, %v42, 0
  %v84 = vsel %vm58, %v43, 0
  %v87 = vsel %vm58, %v44, 0
  %89 = vmatprep.subr.bf16.mxu0 0
  %90 = vmatpush1.bf16.msra.mxu0 %v49
  %91 = vmatprep.subr.bf16.mxu0 0
  %92 = vmatpush1.bf16.msra.mxu0 %v50
  %93 = vmatprep.subr.bf16.mxu0 0
  %94 = vmatpush1.bf16.msra.mxu0 0
  %95 = vmatprep.subr.bf16.mxu0 0
  %96 = vmatpush1.bf16.msra.mxu0 0
  %97 = vmatprep.subr.bf16.mxu0 0
  %98 = vmatpush1.bf16.msra.mxu0 0
  %99 = vmatprep.subr.bf16.mxu0 0
  %100 = vmatpush1.bf16.msra.mxu0 0
  %101 = vmatprep.subr.bf16.mxu0 0
  %102 = vmatpush1.bf16.msra.mxu0 0
  %103 = vmatprep.subr.bf16.mxu0 0
  %104 = vmatpush1.bf16.msra.mxu0 0
  %105 = vmatprep.subr.bf16.mxu0 0
  %106 = vmatpush1.bf16.msra.mxu0 0
  %107 = vmatprep.subr.bf16.mxu0 0
  %108 = vmatpush1.bf16.msra.mxu0 0
  %109 = vmatprep.subr.bf16.mxu0 0
  %110 = vmatpush1.bf16.msra.mxu0 0
  %111 = vmatprep.subr.bf16.mxu0 0
  %112 = vmatpush1.bf16.msra.mxu0 0
  %113 = vmatprep.subr.bf16.mxu0 0
  %114 = vmatpush1.bf16.msra.mxu0 0
  %115 = vmatprep.subr.bf16.mxu0 0
  %116 = vmatpush1.bf16.msra.mxu0 0
  %117 = vmatprep.subr.bf16.mxu0 0
  %118 = vmatpush1.bf16.msra.mxu0 0
  %119 = vmatprep.subr.bf16.mxu0 0
  %120 = vmatpush1.bf16.msra.mxu0 0
  %121 = vmatprep.mubr.bf16.mxu0 0
  %122 = vmatmul.mubr.bf16.gmra.mrb[0].mxu0 %v60
  %v123 = vpop.f32.mrb[0].mxu0
  %v124 = vadd.f32 %v56, %v123
  %v125 = vpop.f32.mrb[0].mxu0
  %v126 = vpop.f32.mrb[0].mxu0
  %v127 = vadd.f32 %v56, %v126
  %v128 = vpop.f32.mrb[0].mxu0
  %129 = vmatprep.mubr.bf16.mxu0 0
  %130 = vmatmul.mubr.bf16.gmra.mrb[0].mxu0 %v63
  %v131 = vpop.f32.mrb[0].mxu0
  %v132 = vadd.f32 %v56, %v131
  %v133 = vpop.f32.mrb[0].mxu0
  %v134 = vpop.f32.mrb[0].mxu0
  %v135 = vadd.f32 %v56, %v134
  %v136 = vpop.f32.mrb[0].mxu0
  %137 = vmatprep.mubr.bf16.mxu0 0
  %138 = vmatmul.mubr.bf16.gmra.mrb[0].mxu0 %v66
  %v139 = vpop.f32.mrb[0].mxu0
  %v140 = vadd.f32 %v56, %v139
  %v141 = vpop.f32.mrb[0].mxu0
  %v142 = vpop.f32.mrb[0].mxu0
  %v143 = vadd.f32 %v56, %v142
  %v144 = vpop.f32.mrb[0].mxu0
  %145 = vmatprep.mubr.bf16.mxu0 0
  %146 = vmatmul.mubr.bf16.gmra.mrb[0].mxu0 %v69
  %v147 = vpop.f32.mrb[0].mxu0
  %v148 = vadd.f32 %v56, %v147
  %v149 = vpop.f32.mrb[0].mxu0
  %v150 = vpop.f32.mrb[0].mxu0
  %v151 = vadd.f32 %v56, %v150
  %v152 = vpop.f32.mrb[0].mxu0
  %153 = vmatprep.mubr.bf16.mxu0 0
  %154 = vmatmul.mubr.bf16.gmra.mrb[0].mxu0 %v72
  %v155 = vpop.f32.mrb[0].mxu0
  %v156 = vadd.f32 %v56, %v155
  %v157 = vpop.f32.mrb[0].mxu0
  %v158 = vpop.f32.mrb[0].mxu0
  %v159 = vadd.f32 %v56, %v158
  %v160 = vpop.f32.mrb[0].mxu0
  %161 = vmatprep.mubr.bf16.mxu0 0
  %162 = vmatmul.mubr.bf16.gmra.mrb[0].mxu0 %v75
  %v163 = vpop.f32.mrb[0].mxu0
  %v164 = vadd.f32 %v56, %v163
  %v165 = vpop.f32.mrb[0].mxu0
  %v166 = vpop.f32.mrb[0].mxu0
  %v167 = vadd.f32 %v56, %v166
  %v168 = vpop.f32.mrb[0].mxu0
  %169 = vmatprep.mubr.bf16.mxu0 0
  %170 = vmatmul.mubr.bf16.gmra.mrb[0].mxu0 %v78
  %v171 = vpop.f32.mrb[0].mxu0
  %v172 = vadd.f32 %v56, %v171
  %v173 = vpop.f32.mrb[0].mxu0
  %v174 = vpop.f32.mrb[0].mxu0
  %v175 = vadd.f32 %v56, %v174
  %v176 = vpop.f32.mrb[0].mxu0
  %177 = vmatprep.mubr.bf16.mxu0 0
  %178 = vmatmul.mubr.bf16.gmra.mrb[0].mxu0 %v81
  %v179 = vpop.f32.mrb[0].mxu0
  %v180 = vadd.f32 %v56, %v179
  %v181 = vpop.f32.mrb[0].mxu0
  %v182 = vpop.f32.mrb[0].mxu0
  %v183 = vadd.f32 %v56, %v182
  %v184 = vpop.f32.mrb[0].mxu0
  %185 = vmatprep.mubr.bf16.mxu0 0
  %186 = vmatmul.mubr.bf16.gmra.mrb[0].mxu0 %v84
  %v187 = vpop.f32.mrb[0].mxu0
  %v188 = vadd.f32 %v56, %v187
  %v189 = vpop.f32.mrb[0].mxu0
  %v190 = vpop.f32.mrb[0].mxu0
  %v191 = vadd.f32 %v56, %v190
  %v192 = vpop.f32.mrb[0].mxu0
  %193 = vmatprep.mubr.bf16.mxu0 0
  %194 = vmatmul.mubr.bf16.gmra.mrb[0].mxu0 %v87
  %v195 = vpop.f32.mrb[0].mxu0
  %v196 = vadd.f32 %v56, %v195
  %v197 = vpop.f32.mrb[0].mxu0
  %v198 = vpop.f32.mrb[0].mxu0
  %v199 = vadd.f32 %v56, %v198
  %v200 = vpop.f32.mrb[0].mxu0
  %201 = vdwg.mxu0
  %202 = vst.msk [vmem:[%s3] sm:$0xff] %vm58, %v124
  %203 = vst.msk [vmem:[%s3 + $0x8] sm:$0xff] %vm58, %v127
  %204 = vst.msk [vmem:[%s3 + $0x10] sm:$0xff] %vm58, %v132
  %205 = vst.msk [vmem:[%s3 + $0x18] sm:$0xff] %vm58, %v135
  %206 = vst.msk [vmem:[%s3 + $0x20] sm:$0xff] %vm58, %v140
  %207 = vst.msk [vmem:[%s3 + $0x28] sm:$0xff] %vm58, %v143
  %208 = vst.msk [vmem:[%s3 + $0x30] sm:$0xff] %vm58, %v148
  %209 = vst.msk [vmem:[%s3 + $0x38] sm:$0xff] %vm58, %v151
  %210 = vst.msk [vmem:[%s3 + $0x40] sm:$0xff] %vm58, %v156
  %211 = vst.msk [vmem:[%s3 + $0x48] sm:$0xff] %vm58, %v159
  %212 = vst.msk [vmem:[%s3 + $0x50] sm:$0xff] %vm58, %v164
  %213 = vst.msk [vmem:[%s3 + $0x58] sm:$0xff] %vm58, %v167
  %214 = vst.msk [vmem:[%s3 + $0x60] sm:$0xff] %vm58, %v172
  %215 = vst.msk [vmem:[%s3 + $0x68] sm:$0xff] %vm58, %v175
  %216 = vst.msk [vmem:[%s3 + $0x70] sm:$0xff] %vm58, %v180
  %217 = vst.msk [vmem:[%s3 + $0x78] sm:$0xff] %vm58, %v183
  %218 = vst.msk [vmem:[%s3 + $0x80] sm:$0xff] %vm58, %v188
  %219 = vst.msk [vmem:[%s3 + $0x88] sm:$0xff] %vm58, %v191
  %220 = vst.msk [vmem:[%s3 + $0x90] sm:$0xff] %vm58, %v196
  %221 = vst.msk [vmem:[%s3 + $0x98] sm:$0xff] %vm58, %v199
  // Predicated region
  $region14: #{tpu_custom_call.1} parent=0 // pred_check
    _
  $region15: #{tpu_custom_call.1} parent=0 // pred_check_branch
    %223 = sbr.rel (0) target = $region17
  $region16: #{tpu_custom_call.1} parent=0 // pred_region
    _
  $region17: #{tpu_custom_call.1} parent=0 // pred_fallthru
    _
  // Predicated region
  $region18: #{tpu_custom_call.1} parent=0 // pred_check
    _
  $region19: #{tpu_custom_call.1} parent=0 // pred_check_branch
    %225 = sbr.rel (0) target = $region21
  $region20: #{tpu_custom_call.1} parent=0 // pred_region
    _
  $region21: #{tpu_custom_call.1} parent=0 // pred_fallthru
    _

</llo_original>
